<compile_context>
chip_gen: v5e
topology: v5e:2x2
jax: 0.10.0
libtpu: 0.0.40
codegen_flags: <defaults>
</compile_context>

<pallas_src>
import functools
import math

import jax
import jax.numpy as jnp
from jax.experimental import pallas as pl
from jax.experimental.pallas import tpu as pltpu


def _centroid_error_kernel(x_ref, yp_ref, psf_ref, xc_ref, yc_ref, out_ref, *,
                           inv_norm):
    """Per-block centroid error.

    x_ref / yp_ref / psf_ref : (TB, HW) lane-dense image tiles.
    xc_ref / yc_ref          : (1, HW)  flattened pixel coordinates (float32).
    out_ref                  : (1, TB)  lane-dense error row for this block.
    """
    f32 = jnp.float32
    # f32 accumulation; subtract after the upcast to preserve cancellation.
    img_est = x_ref[...].astype(f32) - yp_ref[...].astype(f32)   # (TB, HW)
    img_true = psf_ref[...].astype(f32)                          # (TB, HW)
    xc = xc_ref[...]                                             # (1, HW)
    yc = yc_ref[...]                                             # (1, HW)

    def centroid(img):  # img: (TB, HW) f32
        total = jnp.sum(img, axis=-1) + 1e-8        # (TB,)
        sx = jnp.sum(img * xc, axis=-1)             # (TB,)
        sy = jnp.sum(img * yc, axis=-1)             # (TB,)
        inv = 1.0 / total
        return sx * inv, sy * inv

    xt, yt = centroid(img_true)
    xe, ye = centroid(img_est)
    dx = xt - xe
    dy = yt - ye
    err = jnp.sqrt(dx * dx + dy * dy) * inv_norm    # (TB,)
    out_ref[0, :] = err.astype(out_ref.dtype)


def _tpu_vmem_capacity_bytes():
    """Physical per-core VMEM; conservative fallback works on all generations."""
    try:
        return int(pltpu.get_tpu_info().vmem_capacity_bytes)
    except Exception:
        return 64 * 1024 * 1024   # v7x per-TensorCore VMEM (smallest current)


def _choose_block_b(B, HW, itemsize, budget_bytes):
    """Largest batch tile whose working set fits the VMEM budget.

    Working set per batch row:
      3 inputs x 2 pipeline buffers in the *input* dtype (bf16-aware)
      + ~3 f32 in-kernel temporaries (diff image, psf upcast, product).
    """
    per_row = 6 * HW * itemsize + 3 * HW * 4
    tb = max(1, budget_bytes // per_row)
    # Keep >= 2 grid steps so both v7x TensorCores get work, but never break
    # 8-sublane alignment for small B (block sublane dim must be a multiple of
    # 8 or equal to the full batch dim).
    half = -(-B // 2)
    if half >= 8:
        tb = min(tb, -(-half // 8) * 8)
    if tb >= 8:
        tb = (tb // 8) * 8
    return max(1, min(tb, B))


def centroid_error(x, y_pred, y_true, psf, *, block_b=None):
    """Pallas TPU implementation of CentroidError.forward.

    x, y_pred, y_true, psf: (B, 1, H, W).  y_true is unused (matches PyTorch).
    Returns: (B,) centroid error per batch element, in x.dtype.
    """
    del y_true  # not used by the metric
    B, C, H, W = x.shape
    assert C == 1, "CentroidError expects single-channel images (C=1)"
    HW = H * W
    itemsize = jnp.dtype(x.dtype).itemsize

    # Free metadata reshape: channel dim folded away, pixels contiguous on lanes.
    xf = x.reshape(B, HW)
    ypf = y_pred.reshape(B, HW)
    psff = psf.reshape(B, HW)

    # Flattened pixel coordinates (x varies fastest, matching row-major (H, W)).
    x_coords = jnp.tile(jnp.arange(W, dtype=jnp.float32), H).reshape(1, HW)
    y_coords = jnp.repeat(jnp.arange(H, dtype=jnp.float32), W).reshape(1, HW)

    # Generation-aware VMEM budgeting.
    vmem_cap = _tpu_vmem_capacity_bytes()
    budget = min(40 * 1024 * 1024, (vmem_cap * 3) // 8)   # 24 MiB on v7x, 40 MiB on v5e/v6e

    if block_b is None:
        tb = _choose_block_b(B, HW, itemsize, budget)
    else:
        tb = max(1, min(int(block_b), B))
    # Keep the block's sublane dim legal: multiple of 8 or the full batch dim.
    if tb != B and tb % 8 != 0:
        tb = min(B, -(-tb // 8) * 8)

    num_blocks = pl.cdiv(B, tb)

    per_row = 6 * HW * itemsize + 3 * HW * 4
    need = per_row * tb + 8 * 1024 * 1024
    vmem_limit = int(min(max(need, 32 * 1024 * 1024),
                         max(vmem_cap - 8 * 1024 * 1024, 32 * 1024 * 1024)))

    img_spec = pl.BlockSpec((tb, HW), lambda i: (i, 0))
    coord_spec = pl.BlockSpec((1, HW), lambda i: (0, 0))   # constant block, not re-fetched
    out_spec = pl.BlockSpec((1, tb), lambda i: (i, 0))     # lane-dense output row

    cost = pl.CostEstimate(
        flops=11 * B * HW,
        transcendentals=0,
        bytes_accessed=3 * B * HW * itemsize + B * itemsize + 2 * HW * 4,
    )

    kernel = functools.partial(
        _centroid_error_kernel, inv_norm=1.0 / math.sqrt(H * H + W * W))

    out = pl.pallas_call(
        kernel,
        out_shape=jax.ShapeDtypeStruct((num_blocks, tb), x.dtype),
        grid_spec=pltpu.PrefetchScalarGridSpec(
            num_scalar_prefetch=0,
            grid=(num_blocks,),
            in_specs=[img_spec, img_spec, img_spec, coord_spec, coord_spec],
            out_specs=out_spec,
        ),
        compiler_params=pltpu.CompilerParams(
            dimension_semantics=("parallel",),
            vmem_limit_bytes=vmem_limit,
        ),
        cost_estimate=cost,
    )(xf, ypf, psff, x_coords, y_coords)

    # Rows past B in the ragged final block are never written with real data;
    # they are dropped here (no jnp.pad of the inputs was needed).
    return out.reshape(-1)[:B]


def _centroid_error_ref(x, y_pred, y_true, psf):
    """Pure-JAX reference mirroring the PyTorch code."""
    del y_true
    B, C, H, W = x.shape

    def centroid(img):
        img = img[:, 0, :, :].astype(jnp.float32)
        yy = jnp.arange(H, dtype=jnp.float32).reshape(1, H, 1)
        xx = jnp.arange(W, dtype=jnp.float32).reshape(1, 1, W)
        total = jnp.sum(img, axis=(1, 2)) + 1e-8
        xc = jnp.sum(xx * img, axis=(1, 2)) / total
        yc = jnp.sum(yy * img, axis=(1, 2)) / total
        return jnp.stack([xc, yc], axis=1)

    c_true = centroid(psf)
    c_est = centroid(x - y_pred)
    err = jnp.linalg.norm(c_true - c_est, axis=1)
    err = err / jnp.sqrt(jnp.float32(H * H + W * W))
    return err.astype(x.dtype)


if __name__ == "__main__":
    key = jax.random.PRNGKey(0)

    # Test 1: small shapes from the module spec (single block, full-array tiles).
    B, C, H, W = 2, 1, 16, 16
    k1, k2, k3, k4 = jax.random.split(key, 4)
    x = jax.random.uniform(k1, (B, C, H, W), dtype=jnp.float32)
    y_pred = jax.random.uniform(k2, (B, C, H, W), dtype=jnp.float32)
    y_true = jax.random.uniform(k3, (B, C, H, W), dtype=jnp.float32)
    psf = jax.random.uniform(k4, (B, C, H, W), dtype=jnp.float32)

    out = jax.block_until_ready(centroid_error(x, y_pred, y_true, psf))
    ref = _centroid_error_ref(x, y_pred, y_true, psf)
    assert out.shape == (B,)
    assert jnp.allclose(out, ref, atol=1e-4, rtol=1e-4), (out, ref)

    # Test 2: non-square image, B not divisible by the batch tile
    # (exercises the ragged final block — no padding copies are made).
    B2, H2, W2 = 13, 12, 20
    k5, k6, k7, k8 = jax.random.split(jax.random.PRNGKey(1), 4)
    x2 = jax.random.uniform(k5, (B2, C, H2, W2), minval=0.5, maxval=1.0,
                            dtype=jnp.float32)
    y_pred2 = jax.random.uniform(k6, (B2, C, H2, W2), minval=0.0, maxval=0.4,
                                 dtype=jnp.float32)
    y_true2 = jax.random.uniform(k7, (B2, C, H2, W2), dtype=jnp.float32)
    psf2 = jax.random.uniform(k8, (B2, C, H2, W2), minval=0.1, maxval=1.0,
                              dtype=jnp.float32)

    out2 = jax.block_until_ready(
        centroid_error(x2, y_pred2, y_true2, psf2, block_b=8))
    ref2 = _centroid_error_ref(x2, y_pred2, y_true2, psf2)
    assert out2.shape == (B2,)
    assert jnp.allclose(out2, ref2, atol=1e-4, rtol=1e-4), (out2, ref2)

    # Test 3: bf16 inputs (exercises dtype-aware tiling + f32 accumulation).
    B3 = 4
    k9, k10 = jax.random.split(jax.random.PRNGKey(2), 2)
    x3 = jax.random.uniform(k9, (B3, C, H, W), dtype=jnp.float32).astype(jnp.bfloat16)
    y_pred3 = (0.5 * x3.astype(jnp.float32)).astype(jnp.bfloat16)
    psf3 = jax.random.uniform(k10, (B3, C, H, W), minval=0.1, maxval=1.0,
                              dtype=jnp.float32).astype(jnp.bfloat16)
    y_true3 = jnp.zeros_like(x3)

    out3 = jax.block_until_ready(centroid_error(x3, y_pred3, y_true3, psf3))
    ref3 = _centroid_error_ref(x3.astype(jnp.float32), y_pred3.astype(jnp.float32),
                               y_true3.astype(jnp.float32), psf3.astype(jnp.float32))
    assert out3.shape == (B3,)
    assert out3.dtype == jnp.bfloat16
    assert jnp.allclose(out3.astype(jnp.float32), ref3, atol=1e-3, rtol=1e-2), (out3, ref3)

    print("KERNEL_OK")
</pallas_src>

<mosaic_0001>
module attributes {stable_mosaic.version = 11 : i64} {
  func.func @_centroid_error_kernel(%arg0: i32, %arg1: memref<2x256xf32, #tpu.memory_space<vmem>>, %arg2: memref<2x256xf32, #tpu.memory_space<vmem>>, %arg3: memref<2x256xf32, #tpu.memory_space<vmem>>, %arg4: memref<1x256xf32, #tpu.memory_space<vmem>>, %arg5: memref<1x256xf32, #tpu.memory_space<vmem>>, %arg6: memref<1x2xf32, #tpu.memory_space<vmem>>) attributes {dimension_semantics = [#tpu.dimension_semantics<parallel>], iteration_bounds = array<i64: 1>, scalar_prefetch = 0 : i64, scratch_operands = 0 : i64, tpu.core_type = #tpu.core_type<tc>, window_params = [{transform_indices = @transform_0, window_bounds = array<i64: 2, 256>}, {transform_indices = @transform_1, window_bounds = array<i64: 2, 256>}, {transform_indices = @transform_2, window_bounds = array<i64: 2, 256>}, {pipeline_mode = #tpu.pipeline_mode<synchronous>, transform_indices = @transform_3, window_bounds = array<i64: 1, 256>}, {pipeline_mode = #tpu.pipeline_mode<synchronous>, transform_indices = @transform_4, window_bounds = array<i64: 1, 256>}, {transform_indices = @transform_5, window_bounds = array<i64: 1, 2>}]} {
    %c0 = arith.constant 0 : index
    %c0_0 = arith.constant 0 : index
    %0 = vector.load %arg1[%c0, %c0_0] : memref<2x256xf32, #tpu.memory_space<vmem>>, vector<2x256xf32>
    %c0_1 = arith.constant 0 : index
    %c0_2 = arith.constant 0 : index
    %1 = vector.load %arg2[%c0_1, %c0_2] : memref<2x256xf32, #tpu.memory_space<vmem>>, vector<2x256xf32>
    %2 = arith.subf %0, %1 : vector<2x256xf32>
    %c0_3 = arith.constant 0 : index
    %c0_4 = arith.constant 0 : index
    %3 = vector.load %arg3[%c0_3, %c0_4] : memref<2x256xf32, #tpu.memory_space<vmem>>, vector<2x256xf32>
    %c0_5 = arith.constant 0 : index
    %c0_6 = arith.constant 0 : index
    %4 = vector.load %arg4[%c0_5, %c0_6] : memref<1x256xf32, #tpu.memory_space<vmem>>, vector<1x256xf32>
    %c0_7 = arith.constant 0 : index
    %c0_8 = arith.constant 0 : index
    %5 = vector.load %arg5[%c0_7, %c0_8] : memref<1x256xf32, #tpu.memory_space<vmem>>, vector<1x256xf32>
    %cst = arith.constant dense<0.000000e+00> : vector<2xf32>
    %6 = vector.multi_reduction <add>, %3, %cst [1] : vector<2x256xf32> to vector<2xf32>
    %cst_9 = arith.constant 9.99999993E-9 : f32
    %7 = vector.broadcast %cst_9 : f32 to vector<2xf32>
    %8 = arith.addf %6, %7 : vector<2xf32>
    %9 = vector.broadcast %4 : vector<1x256xf32> to vector<2x256xf32>
    %10 = arith.mulf %3, %9 : vector<2x256xf32>
    %cst_10 = arith.constant dense<0.000000e+00> : vector<2xf32>
    %11 = vector.multi_reduction <add>, %10, %cst_10 [1] : vector<2x256xf32> to vector<2xf32>
    %12 = vector.broadcast %5 : vector<1x256xf32> to vector<2x256xf32>
    %13 = arith.mulf %3, %12 : vector<2x256xf32>
    %cst_11 = arith.constant dense<0.000000e+00> : vector<2xf32>
    %14 = vector.multi_reduction <add>, %13, %cst_11 [1] : vector<2x256xf32> to vector<2xf32>
    %cst_12 = arith.constant 1.000000e+00 : f32
    %15 = vector.broadcast %cst_12 : f32 to vector<2xf32>
    %16 = arith.divf %15, %8 : vector<2xf32>
    %17 = arith.mulf %11, %16 : vector<2xf32>
    %18 = arith.mulf %14, %16 : vector<2xf32>
    %cst_13 = arith.constant dense<0.000000e+00> : vector<2xf32>
    %19 = vector.multi_reduction <add>, %2, %cst_13 [1] : vector<2x256xf32> to vector<2xf32>
    %cst_14 = arith.constant 9.99999993E-9 : f32
    %20 = vector.broadcast %cst_14 : f32 to vector<2xf32>
    %21 = arith.addf %19, %20 : vector<2xf32>
    %22 = vector.broadcast %4 : vector<1x256xf32> to vector<2x256xf32>
    %23 = arith.mulf %2, %22 : vector<2x256xf32>
    %cst_15 = arith.constant dense<0.000000e+00> : vector<2xf32>
    %24 = vector.multi_reduction <add>, %23, %cst_15 [1] : vector<2x256xf32> to vector<2xf32>
    %25 = vector.broadcast %5 : vector<1x256xf32> to vector<2x256xf32>
    %26 = arith.mulf %2, %25 : vector<2x256xf32>
    %cst_16 = arith.constant dense<0.000000e+00> : vector<2xf32>
    %27 = vector.multi_reduction <add>, %26, %cst_16 [1] : vector<2x256xf32> to vector<2xf32>
    %cst_17 = arith.constant 1.000000e+00 : f32
    %28 = vector.broadcast %cst_17 : f32 to vector<2xf32>
    %29 = arith.divf %28, %21 : vector<2xf32>
    %30 = arith.mulf %24, %29 : vector<2xf32>
    %31 = arith.mulf %27, %29 : vector<2xf32>
    %32 = arith.subf %17, %30 : vector<2xf32>
    %33 = arith.subf %18, %31 : vector<2xf32>
    %34 = arith.mulf %32, %32 : vector<2xf32>
    %35 = arith.mulf %33, %33 : vector<2xf32>
    %36 = arith.addf %34, %35 : vector<2xf32>
    %37 = math.sqrt %36 : vector<2xf32>
    %cst_18 = arith.constant 0.0441941731 : f32
    %38 = vector.broadcast %cst_18 : f32 to vector<2xf32>
    %39 = arith.mulf %37, %38 : vector<2xf32>
    %c0_19 = arith.constant 0 : index
    %c0_20 = arith.constant 0 : index
    %40 = vector.load %arg6[%c0_19, %c0_20] : memref<1x2xf32, #tpu.memory_space<vmem>>, vector<1x2xf32>
    %41 = vector.shape_cast %40 : vector<1x2xf32> to vector<2xf32>
    %42 = vector.shape_cast %39 : vector<2xf32> to vector<1x2xf32>
    tpu.vector_store %arg6[%c0_19, %c0_20], %42 {strides = array<i32>} : memref<1x2xf32, #tpu.memory_space<vmem>>, vector<1x2xf32>,
    return
  }
  func.func @transform_0(%arg0: i32) -> (i32, i32) {
    %c0_i32 = arith.constant 0 : i32
    %c0_i32_0 = arith.constant 0 : i32
    return %arg0, %c0_i32 : i32, i32
  }
  func.func @transform_1(%arg0: i32) -> (i32, i32) {
    %c0_i32 = arith.constant 0 : i32
    %c0_i32_0 = arith.constant 0 : i32
    return %arg0, %c0_i32 : i32, i32
  }
  func.func @transform_2(%arg0: i32) -> (i32, i32) {
    %c0_i32 = arith.constant 0 : i32
    %c0_i32_0 = arith.constant 0 : i32
    return %arg0, %c0_i32 : i32, i32
  }
  func.func @transform_3(%arg0: i32) -> (i32, i32) {
    %c0_i32 = arith.constant 0 : i32
    %c0_i32_0 = arith.constant 0 : i32
    %c0_i32_1 = arith.constant 0 : i32
    return %c0_i32, %c0_i32_0 : i32, i32
  }
  func.func @transform_4(%arg0: i32) -> (i32, i32) {
    %c0_i32 = arith.constant 0 : i32
    %c0_i32_0 = arith.constant 0 : i32
    %c0_i32_1 = arith.constant 0 : i32
    return %c0_i32, %c0_i32_0 : i32, i32
  }
  func.func @transform_5(%arg0: i32) -> (i32, i32) {
    %c0_i32 = arith.constant 0 : i32
    %c0_i32_0 = arith.constant 0 : i32
    return %arg0, %c0_i32 : i32, i32
  }
}

</mosaic_0001>

<llo_original>
// kernel: tpu_custom_call.1
$region0: #{tpu_custom_call.1}
  #allocation0 [shape = 'u32[]', space=smem, size = 0x4, offset = 0x4, fixed_abs, tag = 'smem constant byte address 0x4 - core index']
  #allocation1 [shape = 'u32[72,128]{1,0:T(1,128)}', space=vmem, size = 0x9000, scoped, tag = 'internal scratch']
  %s0 = inlined_call_operand.hbm [shape: f32[2,256], index: 0, kind: input, shape index: {}]
  %s1 = inlined_call_operand.hbm [shape: f32[2,256], index: 1, kind: input, shape index: {}]
  %s2 = inlined_call_operand.hbm [shape: f32[2,256], index: 2, kind: input, shape index: {}]
  %s3 = inlined_call_operand.vmem [shape: f32[1,256], index: 3, kind: input, shape index: {}]
  %s4 = inlined_call_operand.hbm [shape: f32[1,256], index: 4, kind: input, shape index: {}]
  %s5 = inlined_call_operand.hbm [shape: f32[1,2], index: 5, kind: output, shape index: {}]
  %s6 = sld [smem:[#allocation0]]
  $region46: #{tpu_custom_call.1} parent=0
    _
  %s8 = ssub.s32 1, %s6
  %s9 = scalar_select 0, %s8, %s6
  $region1: #{tpu_custom_call.1} parent=0
    #allocation2 [shape = 'u8[2048]{0}', space=vmem, size = 0x800, scoped, tag = 'input window, operand 0, single buffered']
    #allocation3 [shape = 's32[1]{0}', space=sflag, size = 0x4, scoped, tag = 'scoped memory for tpu_custom_call.1']
    #allocation4 [shape = 's32[1]{0}', space=sflag, size = 0x4, scoped, tag = 'scoped memory for tpu_custom_call.1']
    #allocation5 [shape = 'u8[2048]{0}', space=vmem, size = 0x800, scoped, tag = 'input window, operand 1, single buffered']
    #allocation6 [shape = 's32[1]{0}', space=sflag, size = 0x4, scoped, tag = 'scoped memory for tpu_custom_call.1']
    #allocation7 [shape = 'u8[2048]{0}', space=vmem, size = 0x800, scoped, tag = 'input window, operand 2, single buffered']
    #allocation8 [shape = 'u8[1024]{0}', space=vmem, size = 0x400, scoped, tag = 'input window, operand 4, single buffered']
    #allocation9 [shape = 's32[1]{0}', space=sflag, size = 0x4, scoped, tag = 'scoped memory for tpu_custom_call.1']
    #allocation10 [shape = 'u8[512]{0}', space=vmem, size = 0x400, scoped, tag = 'output window, operand 0, single buffered']
    %10 = vsyncpa [#allocation3], 0
    %11 = vsyncpa [#allocation6], 0
    %12 = vsyncpa [#allocation9], 0
    %13 = vsyncpa [#allocation4], 0
    // Predicated region
    $region2: #{tpu_custom_call.1} parent=1 // pred_check
      _
    $region3: #{tpu_custom_call.1} parent=1 // pred_check_branch
      %15 = sbr.rel (0) target = $region5
    $region4: #{tpu_custom_call.1} parent=1 // pred_region
      %17 = vsyncadd [#allocation3], 0
      %s19 = sshll.u32 %s0, 4
      %s20 = int_to_ptr.hbm [resolvable:$true] %s19
      %s21 = sshll.u32 [#allocation2], 4
      %s22 = int_to_ptr.vmem [resolvable:$true] %s21
      %24 = dma.hbm_to_vmem [thread:$0]  %s20, 64, %s22, [#allocation3]
    $region5: #{tpu_custom_call.1} parent=1 // pred_fallthru
      _
    // Predicated region
    $region6: #{tpu_custom_call.1} parent=1 // pred_check
      _
    $region7: #{tpu_custom_call.1} parent=1 // pred_check_branch
      %26 = sbr.rel (0) target = $region9
    $region8: #{tpu_custom_call.1} parent=1 // pred_region
      %28 = vsyncadd [#allocation6], 0
      %s30 = sshll.u32 %s1, 4
      %s31 = int_to_ptr.hbm [resolvable:$true] %s30
      %s32 = sshll.u32 [#allocation5], 4
      %s33 = int_to_ptr.vmem [resolvable:$true] %s32
      %35 = dma.hbm_to_vmem [thread:$0]  %s31, 64, %s33, [#allocation6]
    $region9: #{tpu_custom_call.1} parent=1 // pred_fallthru
      _
    // Predicated region
    $region10: #{tpu_custom_call.1} parent=1 // pred_check
      _
    $region11: #{tpu_custom_call.1} parent=1 // pred_check_branch
      %37 = sbr.rel (0) target = $region13
    $region12: #{tpu_custom_call.1} parent=1 // pred_region
      %39 = vsyncadd [#allocation6], 0
      %s41 = sshll.u32 %s2, 4
      %s42 = int_to_ptr.hbm [resolvable:$true] %s41
      %s43 = sshll.u32 [#allocation7], 4
      %s44 = int_to_ptr.vmem [resolvable:$true] %s43
      %46 = dma.hbm_to_vmem [thread:$0]  %s42, 64, %s44, [#allocation6]
    $region13: #{tpu_custom_call.1} parent=1 // pred_fallthru
      _
    // Predicated region
    $region14: #{tpu_custom_call.1} parent=1 // pred_check
      _
    $region15: #{tpu_custom_call.1} parent=1 // pred_check_branch
      %48 = sbr.rel (0) target = $region17
    $region16: #{tpu_custom_call.1} parent=1 // pred_region
      _
    $region17: #{tpu_custom_call.1} parent=1 // pred_fallthru
      _
    // Predicated region
    $region18: #{tpu_custom_call.1} parent=1 // pred_check
      _
    $region19: #{tpu_custom_call.1} parent=1 // pred_check_branch
      %50 = sbr.rel (0) target = $region21
    $region20: #{tpu_custom_call.1} parent=1 // pred_region
      %52 = vsyncadd [#allocation9], 0
      %s54 = sshll.u32 %s4, 4
      %s55 = int_to_ptr.hbm [resolvable:$true] %s54
      %s56 = sshll.u32 [#allocation8], 4
      %s57 = int_to_ptr.vmem [resolvable:$true] %s56
      %59 = dma.hbm_to_vmem [thread:$0]  %s55, 32, %s57, [#allocation9]
    $region21: #{tpu_custom_call.1} parent=1 // pred_fallthru
      _
    // Predicated region
    $region22: #{tpu_custom_call.1} parent=1 // pred_check
      _
    $region23: #{tpu_custom_call.1} parent=1 // pred_check_branch
      %61 = sbr.rel (0) target = $region25
    $region24: #{tpu_custom_call.1} parent=1 // pred_region
      %63 = dma.done [#allocation3], 64
    $region25: #{tpu_custom_call.1} parent=1 // pred_fallthru
      _
    // Predicated region
    $region26: #{tpu_custom_call.1} parent=1 // pred_check
      _
    $region27: #{tpu_custom_call.1} parent=1 // pred_check_branch
      %65 = sbr.rel (0) target = $region29
    $region28: #{tpu_custom_call.1} parent=1 // pred_region
      %67 = dma.done [#allocation6], 64
    $region29: #{tpu_custom_call.1} parent=1 // pred_fallthru
      _
    // Predicated region
    $region30: #{tpu_custom_call.1} parent=1 // pred_check
      _
    $region31: #{tpu_custom_call.1} parent=1 // pred_check_branch
      %69 = sbr.rel (0) target = $region33
    $region32: #{tpu_custom_call.1} parent=1 // pred_region
      %71 = dma.done [#allocation6], 64
    $region33: #{tpu_custom_call.1} parent=1 // pred_fallthru
      _
    // Predicated region
    $region34: #{tpu_custom_call.1} parent=1 // pred_check
      _
    $region35: #{tpu_custom_call.1} parent=1 // pred_check_branch
      %73 = sbr.rel (0) target = $region37
    $region36: #{tpu_custom_call.1} parent=1 // pred_region
      %75 = dma.done [#allocation9], 32
    $region37: #{tpu_custom_call.1} parent=1 // pred_fallthru
      _
    %v76 = vld [vmem:[#allocation2] sm:$0xf]
    %v77 = vld [vmem:[#allocation5] sm:$0xf]
    %v78 = vsub.f32 %v76, %v77
    %v79 = vld [vmem:[#allocation7] sm:$0xf]
    %v80 = vld [vmem:[%s3] sm:$0x3]
    %v81 = vld [vmem:[#allocation8] sm:$0x3]
    %83 = vst [vmem:[#allocation1] ss:$4 sm:$0xff] %v79
    %v84 = vld.sshfl [vmem:[#allocation1] sm:$0xff pattern:$0x73625140]
    %v85 = vld.sshfl [vmem:[#allocation1 + $0x8] sm:$0xff pattern:$0x73625140]
    %vm88 = vcmask 1041408
    %v89 = vsel %vm88, %v84, 0.0
    %v90 = vsel %vm88, %v85, 0.0
    %v91 = vadd.f32 %v89, %v90
    %92 = vadd.xlane.f32.xlu0 %v91
    %v93 = vpop.xlane.xlu0 %92
    %v94 = vadd.f32 %v93, 1e-08
    %v96 = vperm.slane %v80, 0
    %v97 = vperm.slane %v80, 1
    %v98 = vrot.slane %v97, 6
    %v99 = vsel %vm88, %v96, %v98
    %v101 = vmul.f32 %v79, %v99
    %103 = vst [vmem:[#allocation1] ss:$4 sm:$0xff] %v101
    %v104 = vld.sshfl [vmem:[#allocation1] sm:$0xff pattern:$0x73625140]
    %v105 = vld.sshfl [vmem:[#allocation1 + $0x8] sm:$0xff pattern:$0x73625140]
    %v108 = vsel %vm88, %v104, 0.0
    %v109 = vsel %vm88, %v105, 0.0
    %v110 = vadd.f32 %v108, %v109
    %111 = vadd.xlane.f32.xlu0 %v110
    %v112 = vpop.xlane.xlu0 %111
    %v114 = vperm.slane %v81, 0
    %v115 = vperm.slane %v81, 1
    %v116 = vrot.slane %v115, 6
    %v117 = vsel %vm88, %v114, %v116
    %v119 = vmul.f32 %v79, %v117
    %121 = vst [vmem:[#allocation1] ss:$4 sm:$0xff] %v119
    %v122 = vld.sshfl [vmem:[#allocation1] sm:$0xff pattern:$0x73625140]
    %v123 = vld.sshfl [vmem:[#allocation1 + $0x8] sm:$0xff pattern:$0x73625140]
    %v126 = vsel %vm88, %v122, 0.0
    %v127 = vsel %vm88, %v123, 0.0
    %v128 = vadd.f32 %v126, %v127
    %129 = vadd.xlane.f32.xlu0 %v128
    %v130 = vpop.xlane.xlu0 %129
    %v131 = vrcp.pop %v94
    %v132 = vmul.f32 %v94, %v131
    %v133 = vsub.f32 1.0, %v132
    %v134 = vmul.f32 %v131, %v133
    %v135 = vadd.f32 %v131, %v134
    %vm136 = vweird.f32 %v94
    %vm137 = vweird.f32 %v131
    %vm138 = vmor %vm136, %vm137
    %v139 = vsel %vm138, %v131, %v135
    %v140 = vand.u32 2147483647, %v94
    %vm141 = vcmp.eq.f32.partialorder %v140, 8.507059e+37
    %v142 = vand.u32 %v94, 2147483648
    %v143 = vor.u32 1.1754944e-38, %v142
    %v144 = vsel %vm141, %v143, %v139
    %v145 = vmul.f32 1.0, %v144
    %v146 = vmul.f32 %v112, %v145
    %v147 = vmul.f32 %v130, %v145
    %149 = vst [vmem:[#allocation1] ss:$4 sm:$0xff] %v78
    %v150 = vld.sshfl [vmem:[#allocation1] sm:$0xff pattern:$0x73625140]
    %v151 = vld.sshfl [vmem:[#allocation1 + $0x8] sm:$0xff pattern:$0x73625140]
    %v154 = vsel %vm88, %v150, 0.0
    %v155 = vsel %vm88, %v151, 0.0
    %v156 = vadd.f32 %v154, %v155
    %157 = vadd.xlane.f32.xlu0 %v156
    %v158 = vpop.xlane.xlu0 %157
    %v159 = vadd.f32 %v158, 1e-08
    %v160 = vmul.f32 %v78, %v99
    %162 = vst [vmem:[#allocation1] ss:$4 sm:$0xff] %v160
    %v163 = vld.sshfl [vmem:[#allocation1] sm:$0xff pattern:$0x73625140]
    %v164 = vld.sshfl [vmem:[#allocation1 + $0x8] sm:$0xff pattern:$0x73625140]
    %v167 = vsel %vm88, %v163, 0.0
    %v168 = vsel %vm88, %v164, 0.0
    %v169 = vadd.f32 %v167, %v168
    %170 = vadd.xlane.f32.xlu0 %v169
    %v171 = vpop.xlane.xlu0 %170
    %v172 = vmul.f32 %v78, %v117
    %174 = vst [vmem:[#allocation1] ss:$4 sm:$0xff] %v172
    %v175 = vld.sshfl [vmem:[#allocation1] sm:$0xff pattern:$0x73625140]
    %v176 = vld.sshfl [vmem:[#allocation1 + $0x8] sm:$0xff pattern:$0x73625140]
    %v179 = vsel %vm88, %v175, 0.0
    %v180 = vsel %vm88, %v176, 0.0
    %v181 = vadd.f32 %v179, %v180
    %182 = vadd.xlane.f32.xlu0 %v181
    %v183 = vpop.xlane.xlu0 %182
    %v184 = vrcp.pop %v159
    %v185 = vmul.f32 %v159, %v184
    %v186 = vsub.f32 1.0, %v185
    %v187 = vmul.f32 %v184, %v186
    %v188 = vadd.f32 %v184, %v187
    %vm189 = vweird.f32 %v159
    %vm190 = vweird.f32 %v184
    %vm191 = vmor %vm189, %vm190
    %v192 = vsel %vm191, %v184, %v188
    %v193 = vand.u32 2147483647, %v159
    %vm194 = vcmp.eq.f32.partialorder %v193, 8.507059e+37
    %v195 = vand.u32 %v159, 2147483648
    %v196 = vor.u32 1.1754944e-38, %v195
    %v197 = vsel %vm194, %v196, %v192
    %v198 = vmul.f32 1.0, %v197
    %v199 = vmul.f32 %v171, %v198
    %v200 = vmul.f32 %v183, %v198
    %v201 = vsub.f32 %v146, %v199
    %v202 = vsub.f32 %v147, %v200
    %v203 = vmul.f32 %v201, %v201
    %v204 = vmul.f32 %v202, %v202
    %v205 = vadd.f32 %v203, %v204
    %v206 = vrsqrt.pop %v205
    %v207 = vmul.f32 %v206, %v205
    %v208 = vmul.f32 %v207, %v206
    %v209 = vmul.f32 0.5, %v208
    %v210 = vsub.f32 1.5, %v209
    %v211 = vmul.f32 %v206, %v210
    %v212 = vmul.f32 %v205, %v211
    %vm213 = vcmp.eq.f32.partialorder %v205, inf
    %v214 = vsel %vm213, %v205, %v212
    %vm215 = vcmp.eq.f32.partialorder %v205, 0.0
    %v216 = vand.u32 %v205, 2147483648
    %v217 = vsel %vm215, %v216, %v214
    %v218 = vmul.f32 %v217, 0.044194173
    %v220 = vlaneseq
    %v221 = vand.u32 %v220, 127
    %v222 = vperm.slane %v218, %v221
    %vm224 = vcmask 8192
    %225 = vst.msk [vmem:[#allocation10] sm:$0x1] %vm224, %v222
    // Predicated region
    $region38: #{tpu_custom_call.1} parent=1 // pred_check
      _
    $region39: #{tpu_custom_call.1} parent=1 // pred_check_branch
      %227 = sbr.rel (0) target = $region41
    $region40: #{tpu_custom_call.1} parent=1 // pred_region
      %229 = vsyncadd [#allocation4], 0
      %s231 = sshll.u32 [#allocation10], 4
      %s232 = int_to_ptr.vmem [resolvable:$true] %s231
      %s233 = sshll.u32 %s5, 4
      %s234 = int_to_ptr.hbm [resolvable:$true] %s233
      %236 = dma.vmem_to_hbm [thread:$0]  %s232, 16, %s234, [#allocation4]
    $region41: #{tpu_custom_call.1} parent=1 // pred_fallthru
      _
    // Predicated region
    $region42: #{tpu_custom_call.1} parent=1 // pred_check
      _
    $region43: #{tpu_custom_call.1} parent=1 // pred_check_branch
      %238 = sbr.rel (0) target = $region45
    $region44: #{tpu_custom_call.1} parent=1 // pred_region
      %240 = dma.done [#allocation4], 16
    $region45: #{tpu_custom_call.1} parent=1 // pred_fallthru
      _
    %241 = vsyncpa [#allocation3], 1
    %242 = vsyncpa [#allocation6], 1
    %243 = vsyncpa [#allocation9], 1
    %244 = vsyncpa [#allocation4], 1

</llo_original>
